<compile_context>
chip_gen: v7x
topology: tpu7x:2x2x1
jax: 0.10.0
libtpu: 0.0.40
codegen_flags: <defaults>
</compile_context>

<pallas_src>
import math
import numpy as np
import jax
import jax.numpy as jnp
from jax import lax
from jax.experimental import pallas as pl
from jax.experimental.pallas import tpu as pltpu


# -----------------------------------------------------------------------------
# Hyperparameters (small, consistent with the module's __init__ / forward)
# -----------------------------------------------------------------------------
NUM_ENT = 20
NUM_REL = 5
EMB_DIM = 32
BATCH = 8
MAX_ARITY = 6

IN_CHANNELS = 1          # grouped conv in the reference only works with 1
OUT_CHANNELS = 4
FILT_H = 1               # input spatial height is 1, so filt_h must be 1
FILT_W = 2
STRIDE = 2

W_OUT = math.floor((EMB_DIM - FILT_W) / STRIDE) + 1
FC_LENGTH = (1 - FILT_H + 1) * W_OUT * OUT_CHANNELS           # == OUT_CHANNELS * W_OUT
FC1_LENGTH = IN_CHANNELS * OUT_CHANNELS * FILT_H * FILT_W

NCHUNK = MAX_ARITY + 2                      # [h0..h5, r, ones]
NOUT = NCHUNK * EMB_DIM                     # 256  (8 chunks x 32 lanes)
KIN = MAX_ARITY * NUM_ENT + NUM_REL         # 125  (one-hot width)
KIN_PAD = ((KIN + 127) // 128) * 128        # 128

assert EMB_DIM % 32 == 0, "roll-tree product assumes 4*EMB_DIM is a lane multiple"


def _round_up(x, m):
    return ((x + m - 1) // m) * m


# -----------------------------------------------------------------------------
# Pallas kernel
#   streamed per row : 8 int32 indices + 16 f32 (ms/bs row) -> 1 f32 out
#   resident in VMEM : S (one-hot target map), Q (affine expansion), G (fused
#                      gather∘conv∘fc weight, block layout [h0 h1 h2 h3 | h4 h5 r 0])
# -----------------------------------------------------------------------------
def hype_kernel(idx_ref, msbsb_ref, sel_ref, affw_ref, g_ref, out_ref):
    bm = idx_ref.shape[0]
    kin = sel_ref.shape[1]          # one-hot width (128)
    nout = g_ref.shape[1]           # 8 * EMB_DIM   (256)
    half = nout // 2                # 4 * EMB_DIM   (128) -> lane-aligned halves
    d = nout // NCHUNK              # EMB_DIM       (32)

    # --- in-kernel one-hot "gather" of entity + relation rows (MXU, exact) ---
    # idx row = [e0..e5, r, 1]; S maps it to a per-lane match target
    # (entity/relation id + chunk offset on real lanes, -1 on pad lanes).
    idxf = idx_ref[...].astype(jnp.float32)                                     # (bm, 8)
    target = jnp.dot(idxf, sel_ref[...], preferred_element_type=jnp.float32)    # (bm, kin)
    lane = lax.broadcasted_iota(jnp.int32, (bm, kin), 1).astype(jnp.float32)
    onehot = jnp.where(lane == target, 1.0, 0.0).astype(g_ref.dtype)            # exact 0/1

    # --- fused gather ∘ grouped-conv ∘ fc:  y = onehot @ G  (one MXU pass) ---
    y = jnp.dot(onehot, g_ref[...], preferred_element_type=jnp.float32)         # (bm, nout) f32

    # --- expand per-position ms/bs to lane-dense scale/shift on the MXU ---
    # aff = [scale | shift], scale_i = ms_i (r:1, ones:0),
    # shift_i = fc_b*ms_i + bs_i (r:0, ones:1)
    aff_in = msbsb_ref[...].astype(affw_ref.dtype)                               # (bm, 16)
    aff = jnp.dot(aff_in, affw_ref[...], preferred_element_type=jnp.float32)     # (bm, 2*nout)
    h = y * aff[:, :nout] + aff[:, nout:]                                        # (bm, nout) f32

    # --- product over the 8 chunks [h0..h5, r, 1] via lane-aligned halves ---
    # lo = [h0 h1 h2 h3], hi = [h4 h5 r 1]; two rolls give the full 7-factor
    # product in lanes [0, d) of m3 (no unaligned lane slices anywhere).
    m1 = h[:, :half] * h[:, half:]
    m2 = m1 * pltpu.roll(m1, shift=2 * d, axis=1)
    m3 = m2 * pltpu.roll(m2, shift=d, axis=1)

    # --- masked lane reduction -> per-row scalar, stored as a (bm, 1) column ---
    lane_h = lax.broadcasted_iota(jnp.int32, (bm, half), 1)
    ssum = jnp.sum(jnp.where(lane_h < d, m3, 0.0), axis=1, keepdims=True)        # (bm, 1)
    out_ref[...] = ssum


def hype_forward_pallas(idx_all, msbsb, S, Q, G, *, bm=None):
    B = idx_all.shape[0]
    assert idx_all.shape[1] == MAX_ARITY + 2 and msbsb.shape[1] == 2 * (MAX_ARITY + 2)
    kin_pad = S.shape[1]
    nout = G.shape[1]

    if bm is None:
        if B <= 128:
            bm = _round_up(max(B, 8), 8)                 # single tiny grid step
        else:
            # keep >=2 grid steps (v7x megacore sharding of the "parallel" axis),
            # cap the row tile at 512 (tile sweep sweet spot, VMEM-safe everywhere)
            bm = min(512, _round_up((B + 1) // 2, 128))
    B_pad = _round_up(B, bm)
    if B_pad != B:                                        # only tiny arrays get padded
        idx_all = jnp.pad(idx_all, ((0, B_pad - B), (0, 0)))
        msbsb = jnp.pad(msbsb, ((0, B_pad - B), (0, 0)))

    grid = (B_pad // bm,)
    flops = int(2 * B_pad * (8 * kin_pad + kin_pad * nout + 16 * 2 * nout) + 12 * B_pad * nout)
    bytes_accessed = int(
        B_pad * (8 * 4 + 16 * 4 + 4)
        + S.size * 4 + Q.size * Q.dtype.itemsize + G.size * G.dtype.itemsize)

    out = pl.pallas_call(
        hype_kernel,
        out_shape=jax.ShapeDtypeStruct((B_pad, 1), jnp.float32),
        grid=grid,
        in_specs=[
            pl.BlockSpec((bm, MAX_ARITY + 2), lambda i: (i, 0)),        # int32 indices
            pl.BlockSpec((bm, 2 * (MAX_ARITY + 2)), lambda i: (i, 0)),  # [ms,1,0,bs,0,1]
            pl.BlockSpec((MAX_ARITY + 2, kin_pad), lambda i: (0, 0)),   # S   (resident)
            pl.BlockSpec((2 * (MAX_ARITY + 2), 2 * nout), lambda i: (0, 0)),  # Q (resident)
            pl.BlockSpec((kin_pad, nout), lambda i: (0, 0)),            # G   (resident)
        ],
        out_specs=pl.BlockSpec((bm, 1), lambda i: (i, 0)),
        compiler_params=pltpu.CompilerParams(dimension_semantics=("parallel",)),
        cost_estimate=pl.CostEstimate(flops=flops, transcendentals=0,
                                      bytes_accessed=bytes_accessed),
    )(idx_all, msbsb, S, Q, G)
    return out[:B, 0]


# -----------------------------------------------------------------------------
# Parameter construction + host-side (batch-independent) weight fusion
# -----------------------------------------------------------------------------
def make_params(key):
    ks = jax.random.split(key, 6)
    E_w = jax.random.normal(ks[0], (NUM_ENT, EMB_DIM), jnp.float32) * 0.1
    R_w = jax.random.normal(ks[1], (NUM_REL, EMB_DIM), jnp.float32) * 0.1
    fc2_w = jax.random.normal(ks[2], (FC1_LENGTH, MAX_ARITY + 1), jnp.float32) * 0.1
    fc2_b = jax.random.normal(ks[3], (FC1_LENGTH,), jnp.float32) * 0.1
    fc_w = jax.random.normal(ks[4], (EMB_DIM, FC_LENGTH), jnp.float32) * 0.1
    fc_b = jax.random.normal(ks[5], (EMB_DIM,), jnp.float32) * 0.1
    return E_w, R_w, fc2_w, fc2_b, fc_w, fc_b


def kernel_for_pos(fc2_w, fc2_b, pos):
    # fc2(one_hot(pos)) == fc2.weight[:, pos] + fc2.bias   -> (FC1_LENGTH,)
    kvec = fc2_w[:, pos] + fc2_b
    # view(-1, in_ch, out_ch, filt_h, filt_w) with in_ch = filt_h = 1
    return kvec.reshape(OUT_CHANNELS, FILT_W)               # K[oc, j]


def conv_as_matmul_matrix(K):
    # M[d, oc*W_OUT + w] = K[oc, d - w*stride] if 0 <= d - w*stride < FILT_W
    M = jnp.zeros((EMB_DIM, OUT_CHANNELS, W_OUT), jnp.float32)
    for w in range(W_OUT):
        for j in range(FILT_W):
            M = M.at[w * STRIDE + j, :, w].set(K[:, j])
    return M.reshape(EMB_DIM, FC_LENGTH)


def build_constants(params, dtype=jnp.float32):
    """Resident kernel constants: fused weight G, one-hot map S, affine map Q."""
    E_w, R_w, fc2_w, fc2_b, fc_w, fc_b = params
    D = EMB_DIM

    # G: rows = one-hot lanes, cols = output chunks [h0..h5, r, ones(zero cols)]
    G = jnp.zeros((KIN_PAD, NOUT), jnp.float32)
    for i in range(MAX_ARITY):
        A_i = conv_as_matmul_matrix(kernel_for_pos(fc2_w, fc2_b, i)) @ fc_w.T   # (D, D)
        G = G.at[i * NUM_ENT:(i + 1) * NUM_ENT, i * D:(i + 1) * D].set(E_w @ A_i)
    G = G.at[MAX_ARITY * NUM_ENT:MAX_ARITY * NUM_ENT + NUM_REL,
             MAX_ARITY * D:(MAX_ARITY + 1) * D].set(R_w)

    # S: [e0..e5, r, 1] (8) -> per-lane match target (id + chunk offset, -1 on pads)
    S = np.zeros((MAX_ARITY + 2, KIN_PAD), np.float32)
    offs = [i * NUM_ENT for i in range(MAX_ARITY)] + [MAX_ARITY * NUM_ENT]
    sizes = [NUM_ENT] * MAX_ARITY + [NUM_REL]
    S[MAX_ARITY + 1, :] = -1.0
    for slot, (o, n) in enumerate(zip(offs, sizes)):
        S[slot, o:o + n] = 1.0
        S[MAX_ARITY + 1, o:o + n] = float(o)

    # Q: [ms(6),1,0, bs(6),0,1] (16) -> [scale(NOUT) | shift(NOUT)]
    Q = np.zeros((2 * (MAX_ARITY + 2), 2 * NOUT), np.float32)
    fc_b_np = np.asarray(fc_b)
    for j in range(NCHUNK):
        Q[j, j * D:(j + 1) * D] = 1.0                              # scale_j = msb[j]
    for j in range(MAX_ARITY):
        Q[j, NOUT + j * D:NOUT + (j + 1) * D] = fc_b_np            # shift_j += ms_j * fc_b
        Q[MAX_ARITY + 2 + j, NOUT + j * D:NOUT + (j + 1) * D] = 1.0  # shift_j += bs_j
    Q[2 * (MAX_ARITY + 2) - 1, NOUT + (NCHUNK - 1) * D:NOUT + NCHUNK * D] = 1.0  # ones chunk

    return G.astype(dtype), jnp.asarray(S), jnp.asarray(Q).astype(dtype)


def build_batch_inputs(r_idx, e_idx_list, ms, bs):
    B = r_idx.shape[0]
    idx_all = jnp.stack(
        list(e_idx_list) + [r_idx, jnp.ones((B,), jnp.int32)], axis=1).astype(jnp.int32)
    msb = jnp.concatenate([ms, jnp.ones((B, 1), jnp.float32), jnp.zeros((B, 1), jnp.float32)], axis=1)
    bsb = jnp.concatenate([bs, jnp.zeros((B, 1), jnp.float32), jnp.ones((B, 1), jnp.float32)], axis=1)
    msbsb = jnp.concatenate([msb, bsb], axis=1).astype(jnp.float32)              # (B, 16)
    return idx_all, msbsb


# -----------------------------------------------------------------------------
# Pure-JAX reference (mirrors the PyTorch semantics) for validation
# -----------------------------------------------------------------------------
def convolve_ref(E_w, fc2_w, fc2_b, fc_w, fc_b, e_idx, pos):
    e = E_w[e_idx]                                          # (B, D)
    K = kernel_for_pos(fc2_w, fc2_b, pos)                   # (out_ch, filt_w)
    starts = jnp.arange(W_OUT) * STRIDE
    idx = starts[:, None] + jnp.arange(FILT_W)[None, :]     # (W_OUT, filt_w)
    windows = e[:, idx]                                     # (B, W_OUT, filt_w)
    feat = jnp.einsum('bwj,oj->bow', windows, K)            # (B, out_ch, W_OUT)
    feat = feat.reshape(e.shape[0], -1)                     # (B, fc_length)
    return feat @ fc_w.T + fc_b                             # (B, D)


def hype_forward_ref(params, r_idx, e_idx_list, ms, bs):
    E_w, R_w, fc2_w, fc2_b, fc_w, fc_b = params
    x = R_w[r_idx]
    for i in range(MAX_ARITY):
        ei = convolve_ref(E_w, fc2_w, fc2_b, fc_w, fc_b, e_idx_list[i], i)
        ei = ei * ms[:, i:i + 1] + bs[:, i:i + 1]
        x = x * ei
    return jnp.sum(x, axis=1)


# -----------------------------------------------------------------------------
if __name__ == "__main__":
    key = jax.random.PRNGKey(0)
    kp, kr, ke, km, kb = jax.random.split(key, 5)

    params = make_params(kp)

    # ---- small batch (B=8): single grid step -------------------------------
    r_idx = jax.random.randint(kr, (BATCH,), 0, NUM_REL)
    e_idx_list = [
        jax.random.randint(jax.random.fold_in(ke, i), (BATCH,), 0, NUM_ENT)
        for i in range(MAX_ARITY)
    ]
    ms = jax.random.uniform(km, (BATCH, MAX_ARITY), jnp.float32)
    bs = jax.random.uniform(kb, (BATCH, MAX_ARITY), jnp.float32) * 0.1

    ref = hype_forward_ref(params, r_idx, e_idx_list, ms, bs)
    idx_all, msbsb = build_batch_inputs(r_idx, e_idx_list, ms, bs)

    G32, S, Q32 = build_constants(params, jnp.float32)
    out = jax.block_until_ready(hype_forward_pallas(idx_all, msbsb, S, Q32, G32))
    assert out.shape == (BATCH,)
    assert jnp.allclose(out, ref, rtol=2e-3, atol=2e-7), (out, ref)

    # ---- bf16 MXU operands (v5e-oriented option; everything else stays f32) -
    Gb, _, Qb = build_constants(params, jnp.bfloat16)
    out_b = jax.block_until_ready(hype_forward_pallas(idx_all, msbsb, S, Qb, Gb))
    assert jnp.allclose(out_b, ref, rtol=0.1, atol=5e-7), (out_b, ref)

    # ---- larger batch (B=200): exercises padding + a 2-step "parallel" grid -
    B2 = 200
    kr2, ke2, km2, kb2 = jax.random.split(jax.random.fold_in(key, 123), 4)
    r_idx2 = jax.random.randint(kr2, (B2,), 0, NUM_REL)
    e_idx_list2 = [
        jax.random.randint(jax.random.fold_in(ke2, i), (B2,), 0, NUM_ENT)
        for i in range(MAX_ARITY)
    ]
    ms2 = jax.random.uniform(km2, (B2, MAX_ARITY), jnp.float32)
    bs2 = jax.random.uniform(kb2, (B2, MAX_ARITY), jnp.float32) * 0.1

    ref2 = hype_forward_ref(params, r_idx2, e_idx_list2, ms2, bs2)
    idx2, msbsb2 = build_batch_inputs(r_idx2, e_idx_list2, ms2, bs2)
    out2 = jax.block_until_ready(hype_forward_pallas(idx2, msbsb2, S, Q32, G32))
    assert out2.shape == (B2,)
    assert jnp.allclose(out2, ref2, rtol=2e-3, atol=2e-7), (out2, ref2)

    print("KERNEL_OK")
</pallas_src>

<mosaic_0001>
module attributes {stable_mosaic.version = 11 : i64} {
  func.func @hype_kernel(%arg0: i32, %arg1: memref<8x8xi32, #tpu.memory_space<vmem>>, %arg2: memref<8x16xf32, #tpu.memory_space<vmem>>, %arg3: memref<8x128xf32, #tpu.memory_space<vmem>>, %arg4: memref<16x512xf32, #tpu.memory_space<vmem>>, %arg5: memref<128x256xf32, #tpu.memory_space<vmem>>, %arg6: memref<8x1xf32, #tpu.memory_space<vmem>>) attributes {dimension_semantics = [#tpu.dimension_semantics<parallel>], iteration_bounds = array<i64: 1>, scalar_prefetch = 0 : i64, scratch_operands = 0 : i64, tpu.core_type = #tpu.core_type<tc>, window_params = [{transform_indices = @transform_0, window_bounds = array<i64: 8, 8>}, {transform_indices = @transform_1, window_bounds = array<i64: 8, 16>}, {pipeline_mode = #tpu.pipeline_mode<synchronous>, transform_indices = @transform_2, window_bounds = array<i64: 8, 128>}, {pipeline_mode = #tpu.pipeline_mode<synchronous>, transform_indices = @transform_3, window_bounds = array<i64: 16, 512>}, {pipeline_mode = #tpu.pipeline_mode<synchronous>, transform_indices = @transform_4, window_bounds = array<i64: 128, 256>}, {transform_indices = @transform_5, window_bounds = array<i64: 8, 1>}]} {
    %c0 = arith.constant 0 : index
    %c0_0 = arith.constant 0 : index
    %0 = vector.load %arg1[%c0, %c0_0] : memref<8x8xi32, #tpu.memory_space<vmem>>, vector<8x8xi32>
    %1 = arith.sitofp %0 : vector<8x8xi32> to vector<8x8xf32>
    %c0_1 = arith.constant 0 : index
    %c0_2 = arith.constant 0 : index
    %2 = vector.load %arg3[%c0_1, %c0_2] : memref<8x128xf32, #tpu.memory_space<vmem>>, vector<8x128xf32>
    %cst = arith.constant dense<0.000000e+00> : vector<8x128xf32>
    %3 = tpu.matmul %1, %2, %cst {dimension_numbers = #tpu.dot_dimension_numbers<[1], [0], [0], [1], [0, 0, 1, 1], [], []>} : vector<8x8xf32>, vector<8x128xf32>, vector<8x128xf32> -> vector<8x128xf32>
    %4 = tpu.iota {dimensions = array<i32: 1>} : vector<8x128xi32>
    %5 = arith.sitofp %4 : vector<8x128xi32> to vector<8x128xf32>
    %6 = arith.cmpf oeq, %5, %3 : vector<8x128xf32>
    %cst_3 = arith.constant 1.000000e+00 : f32
    %cst_4 = arith.constant 0.000000e+00 : f32
    %7 = vector.broadcast %cst_3 : f32 to vector<8x128xf32>
    %8 = vector.broadcast %cst_4 : f32 to vector<8x128xf32>
    %9 = arith.select %6, %7, %8 : vector<8x128xi1>, vector<8x128xf32>
    %c0_5 = arith.constant 0 : index
    %c0_6 = arith.constant 0 : index
    %10 = vector.load %arg5[%c0_5, %c0_6] : memref<128x256xf32, #tpu.memory_space<vmem>>, vector<128x256xf32>
    %cst_7 = arith.constant dense<0.000000e+00> : vector<8x256xf32>
    %11 = tpu.matmul %9, %10, %cst_7 {dimension_numbers = #tpu.dot_dimension_numbers<[1], [0], [0], [1], [0, 0, 1, 1], [], []>} : vector<8x128xf32>, vector<128x256xf32>, vector<8x256xf32> -> vector<8x256xf32>
    %c0_8 = arith.constant 0 : index
    %c0_9 = arith.constant 0 : index
    %12 = vector.load %arg2[%c0_8, %c0_9] : memref<8x16xf32, #tpu.memory_space<vmem>>, vector<8x16xf32>
    %c0_10 = arith.constant 0 : index
    %c0_11 = arith.constant 0 : index
    %13 = vector.load %arg4[%c0_10, %c0_11] : memref<16x512xf32, #tpu.memory_space<vmem>>, vector<16x512xf32>
    %cst_12 = arith.constant dense<0.000000e+00> : vector<8x512xf32>
    %14 = tpu.matmul %12, %13, %cst_12 {dimension_numbers = #tpu.dot_dimension_numbers<[1], [0], [0], [1], [0, 0, 1, 1], [], []>} : vector<8x16xf32>, vector<16x512xf32>, vector<8x512xf32> -> vector<8x512xf32>
    %15 = vector.extract_strided_slice %14 {offsets = [0, 0], sizes = [8, 256], strides = [1, 1]} : vector<8x512xf32> to vector<8x256xf32>
    %16 = arith.mulf %11, %15 : vector<8x256xf32>
    %17 = vector.extract_strided_slice %14 {offsets = [0, 256], sizes = [8, 256], strides = [1, 1]} : vector<8x512xf32> to vector<8x256xf32>
    %18 = arith.addf %16, %17 : vector<8x256xf32>
    %19 = vector.extract_strided_slice %18 {offsets = [0, 0], sizes = [8, 128], strides = [1, 1]} : vector<8x256xf32> to vector<8x128xf32>
    %20 = vector.extract_strided_slice %18 {offsets = [0, 128], sizes = [8, 128], strides = [1, 1]} : vector<8x256xf32> to vector<8x128xf32>
    %21 = arith.mulf %19, %20 : vector<8x128xf32>
    %c64_i32 = arith.constant 64 : i32
    %22 = tpu.dynamic_rotate %21 by %c64_i32 dim 1 : vector<8x128xf32>, i32 -> vector<8x128xf32>
    %23 = arith.mulf %21, %22 : vector<8x128xf32>
    %c32_i32 = arith.constant 32 : i32
    %24 = tpu.dynamic_rotate %23 by %c32_i32 dim 1 : vector<8x128xf32>, i32 -> vector<8x128xf32>
    %25 = arith.mulf %23, %24 : vector<8x128xf32>
    %26 = tpu.iota {dimensions = array<i32: 1>} : vector<8x128xi32>
    %c32_i32_13 = arith.constant 32 : i32
    %27 = vector.broadcast %c32_i32_13 : i32 to vector<8x128xi32>
    %28 = arith.cmpi slt, %26, %27 : vector<8x128xi32>
    %cst_14 = arith.constant 0.000000e+00 : f32
    %29 = vector.broadcast %cst_14 : f32 to vector<8x128xf32>
    %30 = arith.select %28, %25, %29 : vector<8x128xi1>, vector<8x128xf32>
    %cst_15 = arith.constant dense<0.000000e+00> : vector<8xf32>
    %31 = vector.multi_reduction <add>, %30, %cst_15 [1] : vector<8x128xf32> to vector<8xf32>
    %32 = vector.shape_cast %31 : vector<8xf32> to vector<8x1xf32>
    %c0_16 = arith.constant 0 : index
    %c0_17 = arith.constant 0 : index
    %33 = vector.load %arg6[%c0_16, %c0_17] : memref<8x1xf32, #tpu.memory_space<vmem>>, vector<8x1xf32>
    tpu.vector_store %arg6[%c0_16, %c0_17], %32 {strides = array<i32>} : memref<8x1xf32, #tpu.memory_space<vmem>>, vector<8x1xf32>,
    return
  }
  func.func @transform_0(%arg0: i32) -> (i32, i32) {
    %c0_i32 = arith.constant 0 : i32
    %c0_i32_0 = arith.constant 0 : i32
    return %arg0, %c0_i32 : i32, i32
  }
  func.func @transform_1(%arg0: i32) -> (i32, i32) {
    %c0_i32 = arith.constant 0 : i32
    %c0_i32_0 = arith.constant 0 : i32
    return %arg0, %c0_i32 : i32, i32
  }
  func.func @transform_2(%arg0: i32) -> (i32, i32) {
    %c0_i32 = arith.constant 0 : i32
    %c0_i32_0 = arith.constant 0 : i32
    %c0_i32_1 = arith.constant 0 : i32
    return %c0_i32, %c0_i32_0 : i32, i32
  }
  func.func @transform_3(%arg0: i32) -> (i32, i32) {
    %c0_i32 = arith.constant 0 : i32
    %c0_i32_0 = arith.constant 0 : i32
    %c0_i32_1 = arith.constant 0 : i32
    return %c0_i32, %c0_i32_0 : i32, i32
  }
  func.func @transform_4(%arg0: i32) -> (i32, i32) {
    %c0_i32 = arith.constant 0 : i32
    %c0_i32_0 = arith.constant 0 : i32
    %c0_i32_1 = arith.constant 0 : i32
    return %c0_i32, %c0_i32_0 : i32, i32
  }
  func.func @transform_5(%arg0: i32) -> (i32, i32) {
    %c0_i32 = arith.constant 0 : i32
    %c0_i32_0 = arith.constant 0 : i32
    return %arg0, %c0_i32 : i32, i32
  }
}

</mosaic_0001>

<llo_original>
// kernel: tpu_custom_call.1
$region0: #{tpu_custom_call.1}
  #allocation0 [shape = 'u32[]', space=smem, size = 0x4, offset = 0x4, fixed_abs, tag = 'smem constant byte address 0x4 - core index']
  #allocation1 [shape = 'u32[144,128]{1,0:T(1,128)}', space=vmem, size = 0x12000, scoped, tag = 'internal scratch']
  %s0 = inlined_call_operand.hbm [shape: s32[8,8], index: 0, kind: input, shape index: {}]
  %s1 = inlined_call_operand.hbm [shape: f32[8,16], index: 1, kind: input, shape index: {}]
  %s2 = inlined_call_operand.hbm [shape: f32[8,128], index: 2, kind: input, shape index: {}]
  %s3 = inlined_call_operand.hbm [shape: f32[16,512], index: 3, kind: input, shape index: {}]
  %s4 = inlined_call_operand.hbm [shape: f32[128,256], index: 4, kind: input, shape index: {}]
  %s5 = inlined_call_operand.vmem [shape: f32[8,1], index: 5, kind: output, shape index: {}]
  %s6 = sld [smem:[#allocation0]]
  $region50: #{tpu_custom_call.1} parent=0
    _
  %s8 = ssub.s32 1, %s6
  %s9 = scalar_select 0, %s8, %s6
  $region1: #{tpu_custom_call.1} parent=0
    #allocation2 [shape = 'u8[4096]{0}', space=vmem, size = 0x1000, scoped, tag = 'input window, operand 0, single buffered']
    #allocation3 [shape = 's32[1]{0}', space=sflag, size = 0x4, scoped, tag = 'scoped memory for tpu_custom_call.1']
    #allocation4 [shape = 'u8[4096]{0}', space=vmem, size = 0x1000, scoped, tag = 'input window, operand 1, single buffered']
    #allocation5 [shape = 's32[1]{0}', space=sflag, size = 0x4, scoped, tag = 'scoped memory for tpu_custom_call.1']
    #allocation6 [shape = 'u8[4096]{0}', space=vmem, size = 0x1000, scoped, tag = 'input window, operand 2, single buffered']
    #allocation7 [shape = 'u8[32768]{0}', space=vmem, size = 0x8000, scoped, tag = 'input window, operand 3, single buffered']
    #allocation8 [shape = 's32[1]{0}', space=sflag, size = 0x4, scoped, tag = 'scoped memory for tpu_custom_call.1']
    #allocation9 [shape = 'u8[131072]{0}', space=vmem, size = 0x20000, scoped, tag = 'input window, operand 4, single buffered']
    %10 = vsyncpa [#allocation3], 0
    %11 = vsyncpa [#allocation5], 0
    %12 = vsyncpa [#allocation8], 0
    // Predicated region
    $region2: #{tpu_custom_call.1} parent=1 // pred_check
      _
    $region3: #{tpu_custom_call.1} parent=1 // pred_check_branch
      %14 = sbr.rel (0) target = $region5
    $region4: #{tpu_custom_call.1} parent=1 // pred_region
      %s16 = ssub.s32 128, 128
      %17 = vsyncadd [#allocation3], %s16
      %s19 = sshll.u32 [#allocation2], 4
      %s20 = int_to_ptr.vmem [resolvable:$true] %s19
      %22 = dma.hbm_to_vmem [thread:$0]  %s0, 128, %s20, [#allocation3]
    $region5: #{tpu_custom_call.1} parent=1 // pred_fallthru
      _
    // Predicated region
    $region6: #{tpu_custom_call.1} parent=1 // pred_check
      _
    $region7: #{tpu_custom_call.1} parent=1 // pred_check_branch
      %24 = sbr.rel (0) target = $region9
    $region8: #{tpu_custom_call.1} parent=1 // pred_region
      %s26 = ssub.s32 128, 128
      %27 = vsyncadd [#allocation5], %s26
      %s29 = sshll.u32 [#allocation4], 4
      %s30 = int_to_ptr.vmem [resolvable:$true] %s29
      %32 = dma.hbm_to_vmem [thread:$0]  %s1, 128, %s30, [#allocation5]
    $region9: #{tpu_custom_call.1} parent=1 // pred_fallthru
      _
    // Predicated region
    $region10: #{tpu_custom_call.1} parent=1 // pred_check
      _
    $region11: #{tpu_custom_call.1} parent=1 // pred_check_branch
      %34 = sbr.rel (0) target = $region13
    $region12: #{tpu_custom_call.1} parent=1 // pred_region
      %s36 = ssub.s32 128, 128
      %37 = vsyncadd [#allocation5], %s36
      %s39 = sshll.u32 [#allocation6], 4
      %s40 = int_to_ptr.vmem [resolvable:$true] %s39
      %42 = dma.hbm_to_vmem [thread:$0]  %s2, 128, %s40, [#allocation5]
    $region13: #{tpu_custom_call.1} parent=1 // pred_fallthru
      _
    // Predicated region
    $region14: #{tpu_custom_call.1} parent=1 // pred_check
      _
    $region15: #{tpu_custom_call.1} parent=1 // pred_check_branch
      %44 = sbr.rel (0) target = $region17
    $region16: #{tpu_custom_call.1} parent=1 // pred_region
      %s46 = ssub.s32 1024, 1024
      %47 = vsyncadd [#allocation8], %s46
      %s48 = sshll.u32 [#allocation7], 4
      %s49 = int_to_ptr.vmem [resolvable:$true] %s48
      %54 = dma.hbm_to_vmem [thread:$0]  %s3, 1024, %s49, [#allocation8], 512, 512, 32
    $region17: #{tpu_custom_call.1} parent=1 // pred_fallthru
      _
    // Predicated region
    $region18: #{tpu_custom_call.1} parent=1 // pred_check
      _
    $region19: #{tpu_custom_call.1} parent=1 // pred_check_branch
      %56 = sbr.rel (0) target = $region21
    $region20: #{tpu_custom_call.1} parent=1 // pred_region
      %s58 = ssub.s32 4096, 4096
      %59 = vsyncadd [#allocation8], %s58
      %s60 = sshll.u32 [#allocation9], 4
      %s61 = int_to_ptr.vmem [resolvable:$true] %s60
      %66 = dma.hbm_to_vmem [thread:$0]  %s4, 4096, %s61, [#allocation8], 256, 256, 16
    $region21: #{tpu_custom_call.1} parent=1 // pred_fallthru
      _
    // Predicated region
    $region22: #{tpu_custom_call.1} parent=1 // pred_check
      _
    $region23: #{tpu_custom_call.1} parent=1 // pred_check_branch
      %68 = sbr.rel (0) target = $region25
    $region24: #{tpu_custom_call.1} parent=1 // pred_region
      %69 = dma.done [#allocation3], 128
    $region25: #{tpu_custom_call.1} parent=1 // pred_fallthru
      _
    // Predicated region
    $region26: #{tpu_custom_call.1} parent=1 // pred_check
      _
    $region27: #{tpu_custom_call.1} parent=1 // pred_check_branch
      %71 = sbr.rel (0) target = $region29
    $region28: #{tpu_custom_call.1} parent=1 // pred_region
      %72 = dma.done [#allocation5], 128
    $region29: #{tpu_custom_call.1} parent=1 // pred_fallthru
      _
    // Predicated region
    $region30: #{tpu_custom_call.1} parent=1 // pred_check
      _
    $region31: #{tpu_custom_call.1} parent=1 // pred_check_branch
      %74 = sbr.rel (0) target = $region33
    $region32: #{tpu_custom_call.1} parent=1 // pred_region
      %75 = dma.done [#allocation5], 128
    $region33: #{tpu_custom_call.1} parent=1 // pred_fallthru
      _
    // Predicated region
    $region34: #{tpu_custom_call.1} parent=1 // pred_check
      _
    $region35: #{tpu_custom_call.1} parent=1 // pred_check_branch
      %77 = sbr.rel (0) target = $region37
    $region36: #{tpu_custom_call.1} parent=1 // pred_region
      %78 = dma.done [#allocation8], 1024
    $region37: #{tpu_custom_call.1} parent=1 // pred_fallthru
      _
    // Predicated region
    $region38: #{tpu_custom_call.1} parent=1 // pred_check
      _
    $region39: #{tpu_custom_call.1} parent=1 // pred_check_branch
      %80 = sbr.rel (0) target = $region41
    $region40: #{tpu_custom_call.1} parent=1 // pred_region
      %81 = dma.done [#allocation8], 4096
    $region41: #{tpu_custom_call.1} parent=1 // pred_fallthru
      _
    %v82 = vld [vmem:[#allocation2] sm:$0xff]
    %v83 = vcvt.s32.f32 %v82
    %v84 = vld [vmem:[#allocation6] sm:$0xff]
    %vm85 = vcmask 64512
    %v87 = vsel %vm85, %v83, 0
    %89 = vmatprep.subr.mxu0 0.0
    %90 = vmatpush1.msra.mxu0 %v84
    %91 = vmatprep.subr.mxu0 0.0
    %92 = vmatpush1.msra.mxu0 0.0
    %93 = vmatprep.subr.mxu0 0.0
    %94 = vmatpush1.msra.mxu0 0.0
    %95 = vmatprep.subr.mxu0 0.0
    %96 = vmatpush1.msra.mxu0 0.0
    %97 = vmatprep.subr.mxu0 0.0
    %98 = vmatpush1.msra.mxu0 0.0
    %99 = vmatprep.subr.mxu0 0.0
    %100 = vmatpush1.msra.mxu0 0.0
    %101 = vmatprep.subr.mxu0 0.0
    %102 = vmatpush1.msra.mxu0 0.0
    %103 = vmatprep.subr.mxu0 0.0
    %104 = vmatpush1.msra.mxu0 0.0
    %105 = vmatprep.subr.mxu0 0.0
    %106 = vmatpush1.msra.mxu0 0.0
    %107 = vmatprep.subr.mxu0 0.0
    %108 = vmatpush1.msra.mxu0 0.0
    %109 = vmatprep.subr.mxu0 0.0
    %110 = vmatpush1.msra.mxu0 0.0
    %111 = vmatprep.subr.mxu0 0.0
    %112 = vmatpush1.msra.mxu0 0.0
    %113 = vmatprep.subr.mxu0 0.0
    %114 = vmatpush1.msra.mxu0 0.0
    %115 = vmatprep.subr.mxu0 0.0
    %116 = vmatpush1.msra.mxu0 0.0
    %117 = vmatprep.subr.mxu0 0.0
    %118 = vmatpush1.msra.mxu0 0.0
    %119 = vmatprep.subr.mxu0 0.0
    %120 = vmatpush1.msra.mxu0 0.0
    %121 = vmatprep.subr.mxu0 0.0
    %122 = vmatpush1.msra.mxu0 0.0
    %123 = vmatprep.subr.mxu0 0.0
    %124 = vmatpush1.msra.mxu0 0.0
    %125 = vmatprep.subr.mxu0 0.0
    %126 = vmatpush1.msra.mxu0 0.0
    %127 = vmatprep.subr.mxu0 0.0
    %128 = vmatpush1.msra.mxu0 0.0
    %129 = vmatprep.subr.mxu0 0.0
    %130 = vmatpush1.msra.mxu0 0.0
    %131 = vmatprep.subr.mxu0 0.0
    %132 = vmatpush1.msra.mxu0 0.0
    %133 = vmatprep.subr.mxu0 0.0
    %134 = vmatpush1.msra.mxu0 0.0
    %135 = vmatprep.subr.mxu0 0.0
    %136 = vmatpush1.msra.mxu0 0.0
    %137 = vmatprep.subr.mxu0 0.0
    %138 = vmatpush1.msra.mxu0 0.0
    %139 = vmatprep.subr.mxu0 0.0
    %140 = vmatpush1.msra.mxu0 0.0
    %141 = vmatprep.subr.mxu0 0.0
    %142 = vmatpush1.msra.mxu0 0.0
    %143 = vmatprep.subr.mxu0 0.0
    %144 = vmatpush1.msra.mxu0 0.0
    %145 = vmatprep.subr.mxu0 0.0
    %146 = vmatpush1.msra.mxu0 0.0
    %147 = vmatprep.subr.mxu0 0.0
    %148 = vmatpush1.msra.mxu0 0.0
    %149 = vmatprep.subr.mxu0 0.0
    %150 = vmatpush1.msra.mxu0 0.0
    %151 = vmatprep.subr.mxu0 0.0
    %152 = vmatpush1.msra.mxu0 0.0
    %153 = vmatprep.mubr.f32.mxu0 0.0
    %154 = vmatmul.mubr.f32.gmra.mrb[0].mxu0 %v87
    %v155 = vpop.f32.mrb[0].mxu0
    %v156 = vadd.f32 0.0, %v155
    %v157 = vpop.f32.mrb[0].mxu0
    %158 = vdwg.mxu0
    %v159 = vlaneseq
    %v160 = vand.u32 %v159, 127
    %v161 = vcvt.s32.f32 %v160
    %vm162 = vcmp.eq.f32.partialorder %v161, %v156
    %v163 = vsel %vm162, 1.0, 0.0
    %v164 = vld [vmem:[#allocation9] sm:$0xff]
    %v165 = vld [vmem:[#allocation9 + $0x8] sm:$0xff]
    %v166 = vld [vmem:[#allocation9 + $0x10] sm:$0xff]
    %v167 = vld [vmem:[#allocation9 + $0x18] sm:$0xff]
    %v168 = vld [vmem:[#allocation9 + $0x20] sm:$0xff]
    %v169 = vld [vmem:[#allocation9 + $0x28] sm:$0xff]
    %v170 = vld [vmem:[#allocation9 + $0x30] sm:$0xff]
    %v171 = vld [vmem:[#allocation9 + $0x38] sm:$0xff]
    %v172 = vld [vmem:[#allocation9 + $0x40] sm:$0xff]
    %v173 = vld [vmem:[#allocation9 + $0x48] sm:$0xff]
    %v174 = vld [vmem:[#allocation9 + $0x50] sm:$0xff]
    %v175 = vld [vmem:[#allocation9 + $0x58] sm:$0xff]
    %v176 = vld [vmem:[#allocation9 + $0x60] sm:$0xff]
    %v177 = vld [vmem:[#allocation9 + $0x68] sm:$0xff]
    %v178 = vld [vmem:[#allocation9 + $0x70] sm:$0xff]
    %v179 = vld [vmem:[#allocation9 + $0x78] sm:$0xff]
    %v180 = vld [vmem:[#allocation9 + $0x80] sm:$0xff]
    %v181 = vld [vmem:[#allocation9 + $0x88] sm:$0xff]
    %v182 = vld [vmem:[#allocation9 + $0x90] sm:$0xff]
    %v183 = vld [vmem:[#allocation9 + $0x98] sm:$0xff]
    %v184 = vld [vmem:[#allocation9 + $0xa0] sm:$0xff]
    %v185 = vld [vmem:[#allocation9 + $0xa8] sm:$0xff]
    %v186 = vld [vmem:[#allocation9 + $0xb0] sm:$0xff]
    %v187 = vld [vmem:[#allocation9 + $0xb8] sm:$0xff]
    %v188 = vld [vmem:[#allocation9 + $0xc0] sm:$0xff]
    %v189 = vld [vmem:[#allocation9 + $0xc8] sm:$0xff]
    %v190 = vld [vmem:[#allocation9 + $0xd0] sm:$0xff]
    %v191 = vld [vmem:[#allocation9 + $0xd8] sm:$0xff]
    %v192 = vld [vmem:[#allocation9 + $0xe0] sm:$0xff]
    %v193 = vld [vmem:[#allocation9 + $0xe8] sm:$0xff]
    %v194 = vld [vmem:[#allocation9 + $0xf0] sm:$0xff]
    %v195 = vld [vmem:[#allocation9 + $0xf8] sm:$0xff]
    %196 = vmatprep.subr.mxu0 %v165
    %197 = vmatpush1.msra.mxu0 %v164
    %198 = vmatprep.subr.mxu0 %v167
    %199 = vmatpush1.msra.mxu0 %v166
    %200 = vmatprep.subr.mxu0 %v169
    %201 = vmatpush1.msra.mxu0 %v168
    %202 = vmatprep.subr.mxu0 %v171
    %203 = vmatpush1.msra.mxu0 %v170
    %204 = vmatprep.subr.mxu0 %v173
    %205 = vmatpush1.msra.mxu0 %v172
    %206 = vmatprep.subr.mxu0 %v175
    %207 = vmatpush1.msra.mxu0 %v174
    %208 = vmatprep.subr.mxu0 %v177
    %209 = vmatpush1.msra.mxu0 %v176
    %210 = vmatprep.subr.mxu0 %v179
    %211 = vmatpush1.msra.mxu0 %v178
    %212 = vmatprep.subr.mxu0 %v181
    %213 = vmatpush1.msra.mxu0 %v180
    %214 = vmatprep.subr.mxu0 %v183
    %215 = vmatpush1.msra.mxu0 %v182
    %216 = vmatprep.subr.mxu0 %v185
    %217 = vmatpush1.msra.mxu0 %v184
    %218 = vmatprep.subr.mxu0 %v187
    %219 = vmatpush1.msra.mxu0 %v186
    %220 = vmatprep.subr.mxu0 %v189
    %221 = vmatpush1.msra.mxu0 %v188
    %222 = vmatprep.subr.mxu0 %v191
    %223 = vmatpush1.msra.mxu0 %v190
    %224 = vmatprep.subr.mxu0 %v193
    %225 = vmatpush1.msra.mxu0 %v192
    %226 = vmatprep.subr.mxu0 %v195
    %227 = vmatpush1.msra.mxu0 %v194
    %228 = vmatprep.subr.mxu0 0.0
    %229 = vmatpush1.msra.mxu0 0.0
    %230 = vmatprep.subr.mxu0 0.0
    %231 = vmatpush1.msra.mxu0 0.0
    %232 = vmatprep.subr.mxu0 0.0
    %233 = vmatpush1.msra.mxu0 0.0
    %234 = vmatprep.subr.mxu0 0.0
    %235 = vmatpush1.msra.mxu0 0.0
    %236 = vmatprep.subr.mxu0 0.0
    %237 = vmatpush1.msra.mxu0 0.0
    %238 = vmatprep.subr.mxu0 0.0
    %239 = vmatpush1.msra.mxu0 0.0
    %240 = vmatprep.subr.mxu0 0.0
    %241 = vmatpush1.msra.mxu0 0.0
    %242 = vmatprep.subr.mxu0 0.0
    %243 = vmatpush1.msra.mxu0 0.0
    %244 = vmatprep.subr.mxu0 0.0
    %245 = vmatpush1.msra.mxu0 0.0
    %246 = vmatprep.subr.mxu0 0.0
    %247 = vmatpush1.msra.mxu0 0.0
    %248 = vmatprep.subr.mxu0 0.0
    %249 = vmatpush1.msra.mxu0 0.0
    %250 = vmatprep.subr.mxu0 0.0
    %251 = vmatpush1.msra.mxu0 0.0
    %252 = vmatprep.subr.mxu0 0.0
    %253 = vmatpush1.msra.mxu0 0.0
    %254 = vmatprep.subr.mxu0 0.0
    %255 = vmatpush1.msra.mxu0 0.0
    %256 = vmatprep.subr.mxu0 0.0
    %257 = vmatpush1.msra.mxu0 0.0
    %258 = vmatprep.subr.mxu0 0.0
    %259 = vmatpush1.msra.mxu0 0.0
    %260 = vmatprep.mubr.f32.mxu0 0.0
    %261 = vmatmul.mubr.f32.gmra.mrb[0].mxu0 %v163
    %v262 = vpop.f32.mrb[0].mxu0
    %v263 = vadd.f32 0.0, %v262
    %v264 = vpop.f32.mrb[0].mxu0
    %v265 = vadd.f32 0.0, %v264
    %266 = vdwg.mxu0
    %v267 = vld [vmem:[#allocation4] sm:$0xff]
    %v268 = vld [vmem:[#allocation7] sm:$0xff]
    %v269 = vld [vmem:[#allocation7 + $0x8] sm:$0xff]
    %v270 = vld [vmem:[#allocation7 + $0x10] sm:$0xff]
    %v271 = vld [vmem:[#allocation7 + $0x18] sm:$0xff]
    %v272 = vld [vmem:[#allocation7 + $0x20] sm:$0xff]
    %v273 = vld [vmem:[#allocation7 + $0x28] sm:$0xff]
    %v274 = vld [vmem:[#allocation7 + $0x30] sm:$0xff]
    %v275 = vld [vmem:[#allocation7 + $0x38] sm:$0xff]
    %vm276 = vcmask 130048
    %v278 = vsel %vm276, %v267, 0
    %280 = vmatprep.subr.mxu0 %v269
    %281 = vmatpush1.msra.mxu0 %v268
    %282 = vmatprep.subr.mxu0 %v273
    %283 = vmatpush1.msra.mxu0 %v272
    %284 = vmatprep.subr.mxu0 0.0
    %285 = vmatpush1.msra.mxu0 0.0
    %286 = vmatprep.subr.mxu0 0.0
    %287 = vmatpush1.msra.mxu0 0.0
    %288 = vmatprep.subr.mxu0 0.0
    %289 = vmatpush1.msra.mxu0 0.0
    %290 = vmatprep.subr.mxu0 0.0
    %291 = vmatpush1.msra.mxu0 0.0
    %292 = vmatprep.subr.mxu0 0.0
    %293 = vmatpush1.msra.mxu0 0.0
    %294 = vmatprep.subr.mxu0 0.0
    %295 = vmatpush1.msra.mxu0 0.0
    %296 = vmatprep.subr.mxu0 0.0
    %297 = vmatpush1.msra.mxu0 0.0
    %298 = vmatprep.subr.mxu0 0.0
    %299 = vmatpush1.msra.mxu0 0.0
    %300 = vmatprep.subr.mxu0 0.0
    %301 = vmatpush1.msra.mxu0 0.0
    %302 = vmatprep.subr.mxu0 0.0
    %303 = vmatpush1.msra.mxu0 0.0
    %304 = vmatprep.subr.mxu0 0.0
    %305 = vmatpush1.msra.mxu0 0.0
    %306 = vmatprep.subr.mxu0 0.0
    %307 = vmatpush1.msra.mxu0 0.0
    %308 = vmatprep.subr.mxu0 0.0
    %309 = vmatpush1.msra.mxu0 0.0
    %310 = vmatprep.subr.mxu0 0.0
    %311 = vmatpush1.msra.mxu0 0.0
    %312 = vmatprep.subr.mxu0 0.0
    %313 = vmatpush1.msra.mxu0 0.0
    %314 = vmatprep.subr.mxu0 0.0
    %315 = vmatpush1.msra.mxu0 0.0
    %316 = vmatprep.subr.mxu0 0.0
    %317 = vmatpush1.msra.mxu0 0.0
    %318 = vmatprep.subr.mxu0 0.0
    %319 = vmatpush1.msra.mxu0 0.0
    %320 = vmatprep.subr.mxu0 0.0
    %321 = vmatpush1.msra.mxu0 0.0
    %322 = vmatprep.subr.mxu0 0.0
    %323 = vmatpush1.msra.mxu0 0.0
    %324 = vmatprep.subr.mxu0 0.0
    %325 = vmatpush1.msra.mxu0 0.0
    %326 = vmatprep.subr.mxu0 0.0
    %327 = vmatpush1.msra.mxu0 0.0
    %328 = vmatprep.subr.mxu0 0.0
    %329 = vmatpush1.msra.mxu0 0.0
    %330 = vmatprep.subr.mxu0 0.0
    %331 = vmatpush1.msra.mxu0 0.0
    %332 = vmatprep.subr.mxu0 0.0
    %333 = vmatpush1.msra.mxu0 0.0
    %334 = vmatprep.subr.mxu0 0.0
    %335 = vmatpush1.msra.mxu0 0.0
    %336 = vmatprep.subr.mxu0 0.0
    %337 = vmatpush1.msra.mxu0 0.0
    %338 = vmatprep.subr.mxu0 0.0
    %339 = vmatpush1.msra.mxu0 0.0
    %340 = vmatprep.subr.mxu0 0.0
    %341 = vmatpush1.msra.mxu0 0.0
    %342 = vmatprep.subr.mxu0 0.0
    %343 = vmatpush1.msra.mxu0 0.0
    %344 = vmatprep.mubr.f32.mxu0 0.0
    %345 = vmatmul.mubr.f32.gmra.mrb[0].mxu0 %v278
    %v346 = vpop.f32.mrb[0].mxu0
    %v347 = vadd.f32 0.0, %v346
    %v348 = vpop.f32.mrb[0].mxu0
    %v349 = vadd.f32 0.0, %v348
    %350 = vdwg.mxu0
    %351 = vmatprep.subr.mxu0 %v271
    %352 = vmatpush1.msra.mxu0 %v270
    %353 = vmatprep.subr.mxu0 %v275
    %354 = vmatpush1.msra.mxu0 %v274
    %355 = vmatprep.subr.mxu0 0.0
    %356 = vmatpush1.msra.mxu0 0.0
    %357 = vmatprep.subr.mxu0 0.0
    %358 = vmatpush1.msra.mxu0 0.0
    %359 = vmatprep.subr.mxu0 0.0
    %360 = vmatpush1.msra.mxu0 0.0
    %361 = vmatprep.subr.mxu0 0.0
    %362 = vmatpush1.msra.mxu0 0.0
    %363 = vmatprep.subr.mxu0 0.0
    %364 = vmatpush1.msra.mxu0 0.0
    %365 = vmatprep.subr.mxu0 0.0
    %366 = vmatpush1.msra.mxu0 0.0
    %367 = vmatprep.subr.mxu0 0.0
    %368 = vmatpush1.msra.mxu0 0.0
    %369 = vmatprep.subr.mxu0 0.0
    %370 = vmatpush1.msra.mxu0 0.0
    %371 = vmatprep.subr.mxu0 0.0
    %372 = vmatpush1.msra.mxu0 0.0
    %373 = vmatprep.subr.mxu0 0.0
    %374 = vmatpush1.msra.mxu0 0.0
    %375 = vmatprep.subr.mxu0 0.0
    %376 = vmatpush1.msra.mxu0 0.0
    %377 = vmatprep.subr.mxu0 0.0
    %378 = vmatpush1.msra.mxu0 0.0
    %379 = vmatprep.subr.mxu0 0.0
    %380 = vmatpush1.msra.mxu0 0.0
    %381 = vmatprep.subr.mxu0 0.0
    %382 = vmatpush1.msra.mxu0 0.0
    %383 = vmatprep.subr.mxu0 0.0
    %384 = vmatpush1.msra.mxu0 0.0
    %385 = vmatprep.subr.mxu0 0.0
    %386 = vmatpush1.msra.mxu0 0.0
    %387 = vmatprep.subr.mxu0 0.0
    %388 = vmatpush1.msra.mxu0 0.0
    %389 = vmatprep.subr.mxu0 0.0
    %390 = vmatpush1.msra.mxu0 0.0
    %391 = vmatprep.subr.mxu0 0.0
    %392 = vmatpush1.msra.mxu0 0.0
    %393 = vmatprep.subr.mxu0 0.0
    %394 = vmatpush1.msra.mxu0 0.0
    %395 = vmatprep.subr.mxu0 0.0
    %396 = vmatpush1.msra.mxu0 0.0
    %397 = vmatprep.subr.mxu0 0.0
    %398 = vmatpush1.msra.mxu0 0.0
    %399 = vmatprep.subr.mxu0 0.0
    %400 = vmatpush1.msra.mxu0 0.0
    %401 = vmatprep.subr.mxu0 0.0
    %402 = vmatpush1.msra.mxu0 0.0
    %403 = vmatprep.subr.mxu0 0.0
    %404 = vmatpush1.msra.mxu0 0.0
    %405 = vmatprep.subr.mxu0 0.0
    %406 = vmatpush1.msra.mxu0 0.0
    %407 = vmatprep.subr.mxu0 0.0
    %408 = vmatpush1.msra.mxu0 0.0
    %409 = vmatprep.subr.mxu0 0.0
    %410 = vmatpush1.msra.mxu0 0.0
    %411 = vmatprep.subr.mxu0 0.0
    %412 = vmatpush1.msra.mxu0 0.0
    %413 = vmatprep.subr.mxu0 0.0
    %414 = vmatpush1.msra.mxu0 0.0
    %415 = vmatprep.mubr.f32.mxu0 0.0
    %416 = vmatmul.mubr.f32.gmra.mrb[0].mxu0 %v278
    %v417 = vpop.f32.mrb[0].mxu0
    %v418 = vadd.f32 0.0, %v417
    %v419 = vpop.f32.mrb[0].mxu0
    %v420 = vadd.f32 0.0, %v419
    %421 = vdwg.mxu0
    %v422 = vmul.f32 %v263, %v347
    %v423 = vmul.f32 %v265, %v349
    %v424 = vadd.f32 %v422, %v418
    %v425 = vadd.f32 %v423, %v420
    %v426 = vmul.f32 %v424, %v425
    %427 = vrot.lane.b32.xlu0 %v426, 64
    %v428 = vpop.permute.xlu0 %427
    %v429 = vmul.f32 %v426, %v428
    %430 = vrot.lane.b32.xlu0 %v429, 32
    %v431 = vpop.permute.xlu0 %430
    %v432 = vmul.f32 %v429, %v431
    %vm433 = vcmp.lt.s32.totalorder %v160, 32
    %v434 = vsel %vm433, %v432, 0.0
    %435 = vadd.xlane.f32.xlu0 %v434
    %v436 = vpop.xlane.xlu0 %435
    %vm437 = vcmask 7168
    %438 = vst.msk [vmem:[%s5] sm:$0xff] %vm437, %v436
    // Predicated region
    $region42: #{tpu_custom_call.1} parent=1 // pred_check
      _
    $region43: #{tpu_custom_call.1} parent=1 // pred_check_branch
      %440 = sbr.rel (0) target = $region45
    $region44: #{tpu_custom_call.1} parent=1 // pred_region
      _
    $region45: #{tpu_custom_call.1} parent=1 // pred_fallthru
      _
    // Predicated region
    $region46: #{tpu_custom_call.1} parent=1 // pred_check
      _
    $region47: #{tpu_custom_call.1} parent=1 // pred_check_branch
      %442 = sbr.rel (0) target = $region49
    $region48: #{tpu_custom_call.1} parent=1 // pred_region
      _
    $region49: #{tpu_custom_call.1} parent=1 // pred_fallthru
      _
    %443 = vsyncpa [#allocation3], 1
    %444 = vsyncpa [#allocation5], 1
    %445 = vsyncpa [#allocation8], 1

</llo_original>
